<compile_context>
chip_gen: v5e
topology: v5e:2x2
jax: 0.10.0
libtpu: 0.0.40
codegen_flags: <defaults>
</compile_context>

<pallas_src>
import functools

import jax
import jax.numpy as jnp
from jax import lax
from jax.experimental import pallas as pl
from jax.experimental.pallas import tpu as pltpu

LANE = 128
ROW_ALIGN = 16          # min sublane tile for the bf16 target stream
MAX_BLOCK_ROWS = 1024   # (1024,128) f32 block = 512 KiB per stream
SUB_ROWS_PREF = 32      # strip-mine size (rows) inside a block
NUM_CORE_SPLITS = 2     # leading "parallel" axis (v7x megacore; harmless on 1-TC chips)
PAD_LOGIT = -100.0      # sigmoid/focal/bce of a padded element are all ~0


def _cdiv(a, b):
    return -(-a // b)


def _round_up(a, b):
    return _cdiv(a, b) * b


def _mixed_loss_kernel(x_ref, t_ref, out_ref, *, gamma, sub_rows, block_rows,
                       blocks_per_core, valid_rows, need_mask):
    """Accumulates (focal_sum, sum(sig*t), sum(sig), sum(t)) into out_ref.

    out_ref: (4, 8, 128) f32, resident across the inner ("arbitrary") grid
    axis; one such block per value of the leading "parallel" grid axis.
    """
    c = pl.program_id(0)
    i = pl.program_id(1)

    @pl.when(i == 0)
    def _():
        out_ref[...] = jnp.zeros_like(out_ref)

    num_sub = block_rows // sub_rows
    g = float(gamma)
    int_gamma = (g == int(g)) and (0 <= int(g) <= 8)

    if need_mask:
        # Logical (unclamped) first row of this block in the (rows, 128) view.
        block_row0 = (c * blocks_per_core + i) * block_rows

    def fold(v):  # (sub_rows,128) -> (8,128): pure VPU vreg adds, no XLU
        return jnp.sum(v.reshape(sub_rows // 8, 8, LANE), axis=0)

    def body(s, carry):
        acc_focal, acc_sigt, acc_sig, acc_t = carry
        r0 = pl.multiple_of(s * sub_rows, sub_rows)
        x = x_ref[pl.ds(r0, sub_rows), :].astype(jnp.float32)
        t = t_ref[pl.ds(r0, sub_rows), :].astype(jnp.float32)

        if need_mask:
            # Rows past the end of the data hold stale VMEM; replace them with
            # the padding values so they contribute ~0 to every sum.
            row_ids = lax.broadcasted_iota(jnp.int32, (sub_rows, LANE), 0)
            limit = valid_rows - block_row0 - s * sub_rows
            keep = row_ids < limit
            x = jnp.where(keep, x, PAD_LOGIT)
            t = jnp.where(keep, t, 0.0)

        # Shared transcendentals: a = exp(-|x|), lp = log1p(a).
        a = jnp.exp(-jnp.abs(x))
        lp = jnp.log1p(a)

        # Stable BCE-with-logits, identical to the PyTorch formulation:
        #   x - x*t + max(-x,0) + log(exp(-max_val) + exp(-x-max_val))
        #   == max(x,0) - x*t + log1p(exp(-|x|))
        bce = jnp.maximum(x, 0.0) - x * t + lp

        # sigmoid(x) from the shared a.  Divide goes to the EUP (approx recip)
        # plus one Newton step instead of a VALU divide chain.
        one_plus_a = 1.0 + a
        inv = pl.reciprocal(one_plus_a, approx=True)
        inv = inv * (2.0 - one_plus_a * inv)      # 1 NR step: error ~ eps**2
        sig = jnp.where(x >= 0.0, inv, a * inv)

        if int_gamma:
            ig = int(g)
            if ig == 0:
                focal = bce
            else:
                # focal factor = sigmoid(-x*(2t-1))**gamma for binary targets,
                # computed on the VPU only (no extra EUP exp).
                pz = sig + t - 2.0 * (sig * t)    # == sigmoid(-x*(2t-1)), t in {0,1}
                factor = pz
                for _ in range(ig - 1):
                    factor = factor * pz
                focal = factor * bce
        else:
            # General (non-integer) gamma: one extra exp per element.
            z = -x * (2.0 * t - 1.0)
            log_sig = -(jnp.maximum(-z, 0.0) + jnp.log1p(jnp.exp(-jnp.abs(z))))
            focal = jnp.exp(g * log_sig) * bce

        return (acc_focal + fold(focal),
                acc_sigt + fold(sig * t),
                acc_sig + fold(sig),
                acc_t + fold(t))

    zero = jnp.zeros((8, LANE), jnp.float32)
    unroll = 4 if num_sub % 4 == 0 else (2 if num_sub % 2 == 0 else 1)
    acc_focal, acc_sigt, acc_sig, acc_t = lax.fori_loop(
        0, num_sub, body, (zero, zero, zero, zero), unroll=unroll)

    out_ref[0] += acc_focal     # focal-loss numerator
    out_ref[1] += acc_sigt      # dice intersection
    out_ref[2] += acc_sig       # sum(sigmoid(x))
    out_ref[3] += acc_t         # sum(target)


def mixed_loss(x, target, *, alpha, gamma):
    """JAX/Pallas equivalent of MixedLoss(alpha, gamma)(input, target).

    The target stream is carried in bfloat16 and the integer-gamma fast path
    assumes hard binary targets (t in {0,1}); non-integer gamma supports
    arbitrary targets.
    """
    if x.shape != target.shape:
        raise ValueError("Target size must be the same as input size")
    n = x.size

    x_dtype = jnp.bfloat16 if x.dtype == jnp.bfloat16 else jnp.float32
    xf = x.reshape(-1).astype(x_dtype)
    # Binary {0,1} targets are exact in bf16 -> ~25% less HBM traffic.
    tf = target.reshape(-1).astype(jnp.bfloat16)

    # Geometry (all static Python ints).  Common case (n % 128 == 0, n not
    # tiny): zero-copy -- reshape only, overhang masked inside the kernel.
    rows = max(_cdiv(n, LANE), ROW_ALIGN)
    pad = rows * LANE - n
    if pad:
        # Only for tiny or non-128-aligned inputs.
        # TODO(synk): the n % 128 != 0 case still pays one padding copy; a
        # manual-DMA (memory_space=pl.ANY) path could stream the flat buffer
        # directly if that case ever matters.
        xf = jnp.concatenate([xf, jnp.full((pad,), PAD_LOGIT, dtype=x_dtype)])
        tf = jnp.concatenate([tf, jnp.zeros((pad,), dtype=jnp.bfloat16)])
    x2 = xf.reshape(rows, LANE)
    t2 = tf.reshape(rows, LANE)

    rows_per_core = _cdiv(rows, NUM_CORE_SPLITS)
    block_rows = min(MAX_BLOCK_ROWS, _round_up(rows_per_core, ROW_ALIGN))
    blocks_per_core = _cdiv(rows_per_core, block_rows)
    num_row_blocks = _cdiv(rows, block_rows)       # blocks that touch real rows
    last_block = num_row_blocks - 1
    need_mask = NUM_CORE_SPLITS * blocks_per_core * block_rows != rows
    sub_rows = SUB_ROWS_PREF if block_rows % SUB_ROWS_PREF == 0 else ROW_ALIGN

    if need_mask:
        def in_index(c, i):
            # Clamp so a fully-out-of-range block re-reads the last real block;
            # its contribution is masked to zero inside the kernel.
            return (jnp.minimum(c * blocks_per_core + i, last_block), 0)
    else:
        def in_index(c, i):
            return (c * blocks_per_core + i, 0)

    in_spec = pl.BlockSpec((block_rows, LANE), in_index)
    out_spec = pl.BlockSpec((4, 8, LANE), lambda c, i: (c, 0, 0))

    kernel = functools.partial(
        _mixed_loss_kernel, gamma=float(gamma), sub_rows=sub_rows,
        block_rows=block_rows, blocks_per_core=blocks_per_core,
        valid_rows=rows, need_mask=need_mask)

    # TODO(synk): on v7x verify the size-2 "parallel" axis actually shards the
    # grid across both TensorCores (else switch it to pltpu.CORE_PARALLEL).
    partials = pl.pallas_call(
        kernel,
        out_shape=jax.ShapeDtypeStruct((NUM_CORE_SPLITS * 4, 8, LANE), jnp.float32),
        grid=(NUM_CORE_SPLITS, blocks_per_core),
        in_specs=[in_spec, in_spec],
        out_specs=out_spec,
        compiler_params=pltpu.CompilerParams(
            dimension_semantics=("parallel", "arbitrary")),
    )(x2, t2)

    # Tiny cross-core / sublane / lane reduce + scalar dice/log math in JAX.
    sums = jnp.sum(partials.reshape(NUM_CORE_SPLITS, 4, 8, LANE), axis=(0, 2, 3))
    focal_sum, intersection, isum, tsum = sums[0], sums[1], sums[2], sums[3]

    focal_mean = focal_sum / n            # n is the true (unpadded) element count
    smooth = 1.0
    dice = (2.0 * intersection + smooth) / (isum + tsum + smooth)
    loss = alpha * focal_mean - jnp.log(dice)
    return loss  # scalar; .mean() of a scalar is the scalar itself


def _reference(x, t, alpha, gamma):
    # Pure-JAX reference with the PyTorch math, for a sanity check.
    x = x.astype(jnp.float32).reshape(-1)
    t = t.astype(jnp.float32).reshape(-1)
    max_val = jnp.maximum(-x, 0.0)
    bce = x - x * t + max_val + jnp.log(jnp.exp(-max_val) + jnp.exp(-x - max_val))
    focal = jnp.mean(jnp.exp(jax.nn.log_sigmoid(-x * (2 * t - 1)) * gamma) * bce)
    sig = jax.nn.sigmoid(x)
    dice = (2 * jnp.sum(sig * t) + 1.0) / (jnp.sum(sig) + jnp.sum(t) + 1.0)
    return alpha * focal - jnp.log(dice)


if __name__ == "__main__":
    alpha, gamma = 10.0, 2.0
    key = jax.random.PRNGKey(0)
    kx, kt = jax.random.split(key)
    x = jax.random.normal(kx, (2, 4, 16, 16), dtype=jnp.float32)    # logits (NCHW)
    target = (jax.random.uniform(kt, (2, 4, 16, 16)) > 0.5).astype(jnp.float32)

    loss = mixed_loss(x, target, alpha=alpha, gamma=gamma)
    loss = jax.block_until_ready(loss)

    ref = _reference(x, target, alpha, gamma)
    # Tolerance covers the EUP approx-reciprocal (+1 Newton step) sigmoid path.
    assert jnp.allclose(loss, ref, rtol=2e-4, atol=2e-4), (loss, ref)
    print("KERNEL_OK")
</pallas_src>

<mosaic_0001>
module attributes {stable_mosaic.version = 11 : i64} {
  func.func @_mixed_loss_kernel(%arg0: i32, %arg1: i32, %arg2: memref<16x128xf32, #tpu.memory_space<vmem>>, %arg3: memref<16x128xbf16, #tpu.memory_space<vmem>>, %arg4: memref<4x8x128xf32, #tpu.memory_space<vmem>>) attributes {dimension_semantics = [#tpu.dimension_semantics<parallel>, #tpu.dimension_semantics<arbitrary>], iteration_bounds = array<i64: 2, 1>, scalar_prefetch = 0 : i64, scratch_operands = 0 : i64, tpu.core_type = #tpu.core_type<tc>, window_params = [{transform_indices = @transform_0, window_bounds = array<i64: 16, 128>}, {transform_indices = @transform_1, window_bounds = array<i64: 16, 128>}, {transform_indices = @transform_2, window_bounds = array<i64: 4, 8, 128>}]} {
    %c0_i32 = arith.constant 0 : i32
    %0 = arith.cmpi eq, %arg1, %c0_i32 : i32
    %1 = arith.extui %0 : i1 to i32
    %c0_i32_0 = arith.constant 0 : i32
    %2 = arith.cmpi ne, %1, %c0_i32_0 : i32
    scf.if %2 {
      %cst_40 = arith.constant 0.000000e+00 : f32
      %89 = vector.broadcast %cst_40 : f32 to vector<4x8x128xf32>
      %c0_41 = arith.constant 0 : index
      %c0_42 = arith.constant 0 : index
      %c0_43 = arith.constant 0 : index
      %90 = vector.load %arg4[%c0_41, %c0_42, %c0_43] : memref<4x8x128xf32, #tpu.memory_space<vmem>>, vector<4x8x128xf32>
      tpu.vector_store %arg4[%c0_41, %c0_42, %c0_43], %89 {strides = array<i32>} : memref<4x8x128xf32, #tpu.memory_space<vmem>>, vector<4x8x128xf32>,
    } else {
    }
    %c1_i32 = arith.constant 1 : i32
    %3 = arith.muli %arg0, %c1_i32 : i32
    %4 = arith.addi %3, %arg1 : i32
    %c16_i32 = arith.constant 16 : i32
    %5 = arith.muli %4, %c16_i32 : i32
    %cst = arith.constant 0.000000e+00 : f32
    %6 = vector.broadcast %cst : f32 to vector<8x128xf32>
    %c0_i32_1 = arith.constant 0 : i32
    %c16_i32_2 = arith.constant 16 : i32
    %7 = arith.muli %c0_i32_1, %c16_i32_2 : i32
    %8 = tpu.assume_multiple %7, 16 : i32
    %9 = arith.index_cast %8 : i32 to index
    %c0 = arith.constant 0 : index
    %10 = vector.load %arg2[%9, %c0] : memref<16x128xf32, #tpu.memory_space<vmem>>, vector<16x128xf32>
    %11 = arith.index_cast %8 : i32 to index
    %c0_3 = arith.constant 0 : index
    %12 = vector.load %arg3[%11, %c0_3] : memref<16x128xbf16, #tpu.memory_space<vmem>>, vector<16x128xbf16>
    %13 = arith.extf %12 : vector<16x128xbf16> to vector<16x128xf32>
    %14 = tpu.iota {dimensions = array<i32: 0>} : vector<16x128xi32>
    %c16_i32_4 = arith.constant 16 : i32
    %15 = arith.subi %c16_i32_4, %5 : i32
    %c16_i32_5 = arith.constant 16 : i32
    %16 = arith.muli %c0_i32_1, %c16_i32_5 : i32
    %17 = arith.subi %15, %16 : i32
    %18 = vector.broadcast %17 : i32 to vector<16x128xi32>
    %19 = arith.cmpi slt, %14, %18 : vector<16x128xi32>
    %cst_6 = arith.constant -1.000000e+02 : f32
    %20 = vector.broadcast %cst_6 : f32 to vector<16x128xf32>
    %21 = arith.select %19, %10, %20 : vector<16x128xi1>, vector<16x128xf32>
    %cst_7 = arith.constant 0.000000e+00 : f32
    %22 = vector.broadcast %cst_7 : f32 to vector<16x128xf32>
    %23 = arith.select %19, %13, %22 : vector<16x128xi1>, vector<16x128xf32>
    %24 = math.absf %21 : vector<16x128xf32>
    %cst_8 = arith.constant 0.000000e+00 : f32
    %25 = vector.broadcast %cst_8 : f32 to vector<16x128xf32>
    %26 = arith.subf %25, %24 : vector<16x128xf32>
    %27 = math.exp %26 : vector<16x128xf32>
    %28 = math.log1p %27 : vector<16x128xf32>
    %cst_9 = arith.constant 0.000000e+00 : f32
    %29 = vector.broadcast %cst_9 : f32 to vector<16x128xf32>
    %30 = arith.maximumf %21, %29 : vector<16x128xf32>
    %31 = arith.mulf %21, %23 : vector<16x128xf32>
    %32 = arith.subf %30, %31 : vector<16x128xf32>
    %33 = arith.addf %32, %28 : vector<16x128xf32>
    %cst_10 = arith.constant 1.000000e+00 : f32
    %34 = vector.broadcast %cst_10 : f32 to vector<16x128xf32>
    %35 = arith.addf %34, %27 : vector<16x128xf32>
    %36 = tpu.reciprocal %35 {approx = true} : vector<16x128xf32> -> vector<16x128xf32>
    %37 = arith.mulf %35, %36 : vector<16x128xf32>
    %cst_11 = arith.constant 2.000000e+00 : f32
    %38 = vector.broadcast %cst_11 : f32 to vector<16x128xf32>
    %39 = arith.subf %38, %37 : vector<16x128xf32>
    %40 = arith.mulf %36, %39 : vector<16x128xf32>
    %cst_12 = arith.constant 0.000000e+00 : f32
    %41 = vector.broadcast %cst_12 : f32 to vector<16x128xf32>
    %42 = arith.cmpf oge, %21, %41 : vector<16x128xf32>
    %43 = arith.mulf %27, %40 : vector<16x128xf32>
    %44 = arith.select %42, %40, %43 : vector<16x128xi1>, vector<16x128xf32>
    %45 = arith.addf %44, %23 : vector<16x128xf32>
    %46 = arith.mulf %44, %23 : vector<16x128xf32>
    %cst_13 = arith.constant 2.000000e+00 : f32
    %47 = vector.broadcast %cst_13 : f32 to vector<16x128xf32>
    %48 = arith.mulf %47, %46 : vector<16x128xf32>
    %49 = arith.subf %45, %48 : vector<16x128xf32>
    %50 = arith.mulf %49, %49 : vector<16x128xf32>
    %51 = arith.mulf %50, %33 : vector<16x128xf32>
    %52 = vector.shape_cast %51 : vector<16x128xf32> to vector<2x8x128xf32>
    %cst_14 = arith.constant dense<0.000000e+00> : vector<8x128xf32>
    %53 = vector.multi_reduction <add>, %52, %cst_14 [0] : vector<2x8x128xf32> to vector<8x128xf32>
    %54 = arith.addf %6, %53 : vector<8x128xf32>
    %55 = arith.mulf %44, %23 : vector<16x128xf32>
    %56 = vector.shape_cast %55 : vector<16x128xf32> to vector<2x8x128xf32>
    %cst_15 = arith.constant dense<0.000000e+00> : vector<8x128xf32>
    %57 = vector.multi_reduction <add>, %56, %cst_15 [0] : vector<2x8x128xf32> to vector<8x128xf32>
    %58 = arith.addf %6, %57 : vector<8x128xf32>
    %59 = vector.shape_cast %44 : vector<16x128xf32> to vector<2x8x128xf32>
    %cst_16 = arith.constant dense<0.000000e+00> : vector<8x128xf32>
    %60 = vector.multi_reduction <add>, %59, %cst_16 [0] : vector<2x8x128xf32> to vector<8x128xf32>
    %61 = arith.addf %6, %60 : vector<8x128xf32>
    %62 = vector.shape_cast %23 : vector<16x128xf32> to vector<2x8x128xf32>
    %cst_17 = arith.constant dense<0.000000e+00> : vector<8x128xf32>
    %63 = vector.multi_reduction <add>, %62, %cst_17 [0] : vector<2x8x128xf32> to vector<8x128xf32>
    %64 = arith.addf %6, %63 : vector<8x128xf32>
    %c1_i32_18 = arith.constant 1 : i32
    %c0_19 = arith.constant 0 : index
    %c0_20 = arith.constant 0 : index
    %c0_21 = arith.constant 0 : index
    %65 = vector.load %arg4[%c0_19, %c0_20, %c0_21] : memref<4x8x128xf32, #tpu.memory_space<vmem>>, vector<1x8x128xf32>
    %66 = vector.shape_cast %65 : vector<1x8x128xf32> to vector<8x128xf32>
    %67 = arith.addf %66, %54 : vector<8x128xf32>
    %c0_22 = arith.constant 0 : index
    %c0_23 = arith.constant 0 : index
    %c0_24 = arith.constant 0 : index
    %68 = vector.load %arg4[%c0_22, %c0_23, %c0_24] : memref<4x8x128xf32, #tpu.memory_space<vmem>>, vector<1x8x128xf32>
    %69 = vector.shape_cast %68 : vector<1x8x128xf32> to vector<8x128xf32>
    %70 = vector.shape_cast %67 : vector<8x128xf32> to vector<1x8x128xf32>
    tpu.vector_store %arg4[%c0_22, %c0_23, %c0_24], %70 {strides = array<i32>} : memref<4x8x128xf32, #tpu.memory_space<vmem>>, vector<1x8x128xf32>,
    %c1 = arith.constant 1 : index
    %c0_25 = arith.constant 0 : index
    %c0_26 = arith.constant 0 : index
    %71 = vector.load %arg4[%c1, %c0_25, %c0_26] : memref<4x8x128xf32, #tpu.memory_space<vmem>>, vector<1x8x128xf32>
    %72 = vector.shape_cast %71 : vector<1x8x128xf32> to vector<8x128xf32>
    %73 = arith.addf %72, %58 : vector<8x128xf32>
    %c1_27 = arith.constant 1 : index
    %c0_28 = arith.constant 0 : index
    %c0_29 = arith.constant 0 : index
    %74 = vector.load %arg4[%c1_27, %c0_28, %c0_29] : memref<4x8x128xf32, #tpu.memory_space<vmem>>, vector<1x8x128xf32>
    %75 = vector.shape_cast %74 : vector<1x8x128xf32> to vector<8x128xf32>
    %76 = vector.shape_cast %73 : vector<8x128xf32> to vector<1x8x128xf32>
    tpu.vector_store %arg4[%c1_27, %c0_28, %c0_29], %76 {strides = array<i32>} : memref<4x8x128xf32, #tpu.memory_space<vmem>>, vector<1x8x128xf32>,
    %c2 = arith.constant 2 : index
    %c0_30 = arith.constant 0 : index
    %c0_31 = arith.constant 0 : index
    %77 = vector.load %arg4[%c2, %c0_30, %c0_31] : memref<4x8x128xf32, #tpu.memory_space<vmem>>, vector<1x8x128xf32>
    %78 = vector.shape_cast %77 : vector<1x8x128xf32> to vector<8x128xf32>
    %79 = arith.addf %78, %61 : vector<8x128xf32>
    %c2_32 = arith.constant 2 : index
    %c0_33 = arith.constant 0 : index
    %c0_34 = arith.constant 0 : index
    %80 = vector.load %arg4[%c2_32, %c0_33, %c0_34] : memref<4x8x128xf32, #tpu.memory_space<vmem>>, vector<1x8x128xf32>
    %81 = vector.shape_cast %80 : vector<1x8x128xf32> to vector<8x128xf32>
    %82 = vector.shape_cast %79 : vector<8x128xf32> to vector<1x8x128xf32>
    tpu.vector_store %arg4[%c2_32, %c0_33, %c0_34], %82 {strides = array<i32>} : memref<4x8x128xf32, #tpu.memory_space<vmem>>, vector<1x8x128xf32>,
    %c3 = arith.constant 3 : index
    %c0_35 = arith.constant 0 : index
    %c0_36 = arith.constant 0 : index
    %83 = vector.load %arg4[%c3, %c0_35, %c0_36] : memref<4x8x128xf32, #tpu.memory_space<vmem>>, vector<1x8x128xf32>
    %84 = vector.shape_cast %83 : vector<1x8x128xf32> to vector<8x128xf32>
    %85 = arith.addf %84, %64 : vector<8x128xf32>
    %c3_37 = arith.constant 3 : index
    %c0_38 = arith.constant 0 : index
    %c0_39 = arith.constant 0 : index
    %86 = vector.load %arg4[%c3_37, %c0_38, %c0_39] : memref<4x8x128xf32, #tpu.memory_space<vmem>>, vector<1x8x128xf32>
    %87 = vector.shape_cast %86 : vector<1x8x128xf32> to vector<8x128xf32>
    %88 = vector.shape_cast %85 : vector<8x128xf32> to vector<1x8x128xf32>
    tpu.vector_store %arg4[%c3_37, %c0_38, %c0_39], %88 {strides = array<i32>} : memref<4x8x128xf32, #tpu.memory_space<vmem>>, vector<1x8x128xf32>,
    return
  }
  func.func @transform_0(%arg0: i32, %arg1: i32) -> (i32, i32) {
    %c1_i32 = arith.constant 1 : i32
    %0 = arith.muli %arg0, %c1_i32 : i32
    %1 = arith.addi %0, %arg1 : i32
    %c0_i32 = arith.constant 0 : i32
    %2 = arith.minsi %1, %c0_i32 : i32
    %c0_i32_0 = arith.constant 0 : i32
    %c0_i32_1 = arith.constant 0 : i32
    return %2, %c0_i32_0 : i32, i32
  }
  func.func @transform_1(%arg0: i32, %arg1: i32) -> (i32, i32) {
    %c1_i32 = arith.constant 1 : i32
    %0 = arith.muli %arg0, %c1_i32 : i32
    %1 = arith.addi %0, %arg1 : i32
    %c0_i32 = arith.constant 0 : i32
    %2 = arith.minsi %1, %c0_i32 : i32
    %c0_i32_0 = arith.constant 0 : i32
    %c0_i32_1 = arith.constant 0 : i32
    return %2, %c0_i32_0 : i32, i32
  }
  func.func @transform_2(%arg0: i32, %arg1: i32) -> (i32, i32, i32) {
    %c0_i32 = arith.constant 0 : i32
    %c0_i32_0 = arith.constant 0 : i32
    %c0_i32_1 = arith.constant 0 : i32
    return %arg0, %c0_i32, %c0_i32_0 : i32, i32, i32
  }
}

</mosaic_0001>

<llo_original>
// kernel: tpu_custom_call.1
$region0: #{tpu_custom_call.1}
  #allocation0 [shape = 'u32[]', space=smem, size = 0x4, offset = 0x4, fixed_abs, tag = 'smem constant byte address 0x4 - core index']
  #allocation1 [shape = 'u32[72,128]{1,0:T(1,128)}', space=vmem, size = 0x9000, scoped, tag = 'internal scratch']
  %s0 = inlined_call_operand.hbm [shape: f32[16,128], index: 0, kind: input, shape index: {}]
  %s1 = inlined_call_operand.hbm [shape: bf16[16,128], index: 1, kind: input, shape index: {}]
  %s2 = inlined_call_operand.hbm [shape: f32[8,8,128], index: 2, kind: output, shape index: {}]
  %s3 = sld [smem:[#allocation0]]
  $region53: #{tpu_custom_call.1} parent=0
    _
  %s5 = ssub.s32 1, %s3
  %s6 = scalar_select 0, %s5, %s3
  $region1: #{tpu_custom_call.1} parent=0
    #allocation2 [shape = 'u8[16384]{0}', space=vmem, size = 0x4000, scoped, tag = 'input window, operand 0']
    #allocation3 [shape = 's32[2]{0}', space=sflag, size = 0x8, scoped, tag = 'scoped memory for tpu_custom_call.1']
    #allocation4 [shape = 's32[2]{0}', space=sflag, size = 0x8, scoped, tag = 'scoped memory for tpu_custom_call.1']
    #allocation5 [shape = 'u8[8192]{0}', space=vmem, size = 0x2000, scoped, tag = 'input window, operand 1']
    #allocation6 [shape = 's32[2]{0}', space=sflag, size = 0x8, scoped, tag = 'scoped memory for tpu_custom_call.1']
    #allocation7 [shape = 'u8[32768]{0}', space=vmem, size = 0x8000, scoped, tag = 'output window, operand 0']
    %7 = vsyncpa [#allocation3], 0
    %s8 = scalar_lea.sflag [#allocation3], 1
    %9 = vsyncpa %s8, 0
    %10 = vsyncpa [#allocation6], 0
    %s11 = scalar_lea.sflag [#allocation6], 1
    %12 = vsyncpa %s11, 0
    %13 = vsyncpa [#allocation4], 0
    %s14 = scalar_lea.sflag [#allocation4], 1
    %15 = vsyncpa %s14, 0
    loop: start=0, step=1, limit=4
    $region2: #{tpu_custom_call.1} parent=1 // loop_pre_header
      _
    $region3: #{tpu_custom_call.1} parent=1 // loop_header
      %s17 = sphi 0, %s21
      %p18 = scmp.ge.s32.totalorder %s17, 4
      %s24 = sphi 0, %s36
      %s25 = sphi 0, %s32
      %s26 = sphi 0, %s24
      %s27 = sphi 0, %s25
      %s28 = sphi 0, %s26
      %s29 = sphi 0, %s27
      %s45 = sphi 0, %s47
      %s48 = sphi 0, %s45
      %s49 = sphi 0, %s48
      %s65 = sphi 0, %s49
      %s77 = sphi 0, %s79
      %s80 = sphi 0, %s77
      %s81 = sphi 0, %s80
      %s97 = sphi 0, %s81
      %s103 = sphi 0, %s105
      %s106 = sphi 0, %s103
      %s107 = sphi 0, %s106
      %s123 = sphi 0, %s107
    $region4: #{tpu_custom_call.1} parent=1 // loop_header_branch
      %20 = sbr.rel (%p18) target = $region8
    $region5: #{tpu_custom_call.1} parent=1 // loop_body
      %s22 = ssub.s32 %s17, 1
      %s23 = ssub.s32 %s17, 2
      %s30 = sadd.s32 1, %s25
      %p31 = scmp.ge.s32.totalorder %s30, 1
      %s32 = scalar_select %p31, 0, %s30
      %s33 = sadd.s32 1, %s24
      %s34 = scalar_select %p31, %s33, %s24
      %p35 = scmp.ge.s32.totalorder %s34, 2
      %s36 = scalar_select %p35, 0, %s34
      %s37 = sadd.s32 %s24, %s25
      %p38 = scmp.lt.s32.totalorder %s37, 0
      %s39 = scalar_select %p38, %s37, 0
      %s40 = sadd.s32 %s36, %s32
      %p41 = scmp.lt.s32.totalorder %s40, 0
      %s42 = scalar_select %p41, %s40, 0
      %s43 = ssub.s32 %s39, %s42
      %p44 = scmp.eq.s32.totalorder %s43, 0
      %s46 = sadd.s32 %s45, 1
      %s47 = scalar_select %p44, %s45, %s46
      %p50 = pneg %p44
      %p51 = scmp.eq.s32.totalorder %s17, 1
      %p52 = por %p50, %p51
      %p53 = scmp.ne.s32.totalorder %s45, %s48
      %p54 = scmp.eq.s32.totalorder %s17, 0
      %p55 = por %p53, %p54
      %p56 = scmp.ne.s32.totalorder %s45, %s48
      %p57 = scmp.eq.s32.totalorder %s22, 1
      %p58 = por %p56, %p57
      %p59 = scmp.ne.s32.totalorder %s48, %s49
      %p60 = scmp.eq.s32.totalorder %s22, 0
      %p61 = por %p59, %p60
      %p62 = scmp.ne.s32.totalorder %s48, %s49
      %p63 = scmp.eq.s32.totalorder %s23, 1
      %p64 = por %p62, %p63
      %p66 = scmp.ne.s32.totalorder %s49, %s65
      %p67 = scmp.eq.s32.totalorder %s23, 0
      %p68 = por %p66, %p67
      %s69 = sadd.s32 %s24, %s25
      %p70 = scmp.lt.s32.totalorder %s69, 0
      %s71 = scalar_select %p70, %s69, 0
      %s72 = sadd.s32 %s36, %s32
      %p73 = scmp.lt.s32.totalorder %s72, 0
      %s74 = scalar_select %p73, %s72, 0
      %s75 = ssub.s32 %s71, %s74
      %p76 = scmp.eq.s32.totalorder %s75, 0
      %s78 = sadd.s32 %s77, 1
      %s79 = scalar_select %p76, %s77, %s78
      %p82 = pneg %p76
      %p83 = scmp.eq.s32.totalorder %s17, 1
      %p84 = por %p82, %p83
      %p85 = scmp.ne.s32.totalorder %s77, %s80
      %p86 = scmp.eq.s32.totalorder %s17, 0
      %p87 = por %p85, %p86
      %p88 = scmp.ne.s32.totalorder %s77, %s80
      %p89 = scmp.eq.s32.totalorder %s22, 1
      %p90 = por %p88, %p89
      %p91 = scmp.ne.s32.totalorder %s80, %s81
      %p92 = scmp.eq.s32.totalorder %s22, 0
      %p93 = por %p91, %p92
      %p94 = scmp.ne.s32.totalorder %s80, %s81
      %p95 = scmp.eq.s32.totalorder %s23, 1
      %p96 = por %p94, %p95
      %p98 = scmp.ne.s32.totalorder %s81, %s97
      %p99 = scmp.eq.s32.totalorder %s23, 0
      %p100 = por %p98, %p99
      %s101 = ssub.s32 %s24, %s36
      %p102 = scmp.eq.s32.totalorder %s101, 0
      %s104 = sadd.s32 %s103, 1
      %s105 = scalar_select %p102, %s103, %s104
      %p108 = pneg %p102
      %p109 = scmp.eq.s32.totalorder %s17, 1
      %p110 = por %p108, %p109
      %p111 = scmp.ne.s32.totalorder %s103, %s106
      %p112 = scmp.eq.s32.totalorder %s17, 0
      %p113 = por %p111, %p112
      %p114 = scmp.ne.s32.totalorder %s103, %s106
      %p115 = scmp.eq.s32.totalorder %s22, 1
      %p116 = por %p114, %p115
      %p117 = scmp.ne.s32.totalorder %s106, %s107
      %p118 = scmp.eq.s32.totalorder %s22, 0
      %p119 = por %p117, %p118
      %p120 = scmp.ne.s32.totalorder %s106, %s107
      %p121 = scmp.eq.s32.totalorder %s23, 1
      %p122 = por %p120, %p121
      %p124 = scmp.ne.s32.totalorder %s107, %s123
      %p125 = scmp.eq.s32.totalorder %s23, 0
      %p126 = por %p124, %p125
      %p127 = scmp.le.s32.totalorder 1, %s17
      %p128 = scmp.lt.s32.totalorder %s17, 3
      %p129 = pnand %p127, %p128
      %p130 = pneg %p129
      // Predicated region
      $region9: #{tpu_custom_call.1} parent=5 // pred_check
        _
      $region10: #{tpu_custom_call.1} parent=5 // pred_check_branch
        %132 = sbr.rel (%p129) target = $region12
      $region11: #{tpu_custom_call.1} parent=5 // pred_region
        %s133 = ssub.s32 %s17, 1
      $region12: #{tpu_custom_call.1} parent=5 // pred_fallthru
        _
      %p134 = scmp.lt.s32.totalorder %s17, 2
      // Predicated region
      $region13: #{tpu_custom_call.1} parent=5 // pred_check
        %p135 = pneg %p134
      $region14: #{tpu_custom_call.1} parent=5 // pred_check_branch
        %137 = sbr.rel (%p135) target = $region16
      $region15: #{tpu_custom_call.1} parent=5 // pred_region
        // Predicated region
        $region17: #{tpu_custom_call.1} parent=15 // pred_check
          %p138 = pneg %p55
        $region18: #{tpu_custom_call.1} parent=15 // pred_check_branch
          %140 = sbr.rel (%p138) target = $region20
        $region19: #{tpu_custom_call.1} parent=15 // pred_region
          %s141 = sand.u32 %s45, 1
          %s142 = scalar_lea.sflag [#allocation3], %s141
          %s143 = sand.u32 %s45, 1
          %s144 = smul.addr %s143, 16
          %s145 = scalar_lea.vmem [#allocation2], %s144
          %s146 = sadd.s32 %s24, %s25
          %p147 = scmp.lt.s32.totalorder %s146, 0
          %s148 = scalar_select %p147, %s146, 0
          %s149 = smul.u32 2, %s148
          %151 = vsyncadd %s142, 0
          %s152 = smul.addr %s149, 8
          %s153 = scalar_lea.hbm %s0, %s152
          %s154 = sshll.u32 %s153, 4
          %s155 = int_to_ptr.hbm [resolvable:$true] %s154
          %s156 = sshll.u32 %s145, 4
          %s157 = int_to_ptr.vmem [resolvable:$true] %s156
          %162 = dma.hbm_to_vmem [thread:$0]  %s155, 256, %s157, %s142, 128, 128, 8
        $region20: #{tpu_custom_call.1} parent=15 // pred_fallthru
          _
        // Predicated region
        $region21: #{tpu_custom_call.1} parent=15 // pred_check
          %p163 = pneg %p87
        $region22: #{tpu_custom_call.1} parent=15 // pred_check_branch
          %165 = sbr.rel (%p163) target = $region24
        $region23: #{tpu_custom_call.1} parent=15 // pred_region
          %s166 = sand.u32 %s77, 1
          %s167 = scalar_lea.sflag [#allocation6], %s166
          %s168 = sand.u32 %s77, 1
          %s169 = smul.addr %s168, 8
          %s170 = scalar_lea.vmem [#allocation5], %s169
          %s171 = sadd.s32 %s24, %s25
          %p172 = scmp.lt.s32.totalorder %s171, 0
          %s173 = scalar_select %p172, %s171, 0
          %s174 = smul.u32 2, %s173
          %176 = vsyncadd %s167, 0
          %s177 = smul.addr %s174, 4
          %s178 = scalar_lea.hbm %s1, %s177
          %s179 = sshll.u32 %s178, 4
          %s180 = int_to_ptr.hbm [resolvable:$true] %s179
          %s181 = sshll.u32 %s170, 4
          %s182 = int_to_ptr.vmem [resolvable:$true] %s181
          %187 = dma.hbm_to_vmem [thread:$0]  %s180, 128, %s182, %s167, 64, 64, 4
        $region24: #{tpu_custom_call.1} parent=15 // pred_fallthru
          _
      $region16: #{tpu_custom_call.1} parent=5 // pred_fallthru
        _
      %p188 = scmp.le.s32.totalorder 1, %s17
      %p189 = scmp.lt.s32.totalorder %s17, 3
      %p190 = pnand %p188, %p189
      %p191 = pneg %p190
      // Predicated region
      $region25: #{tpu_custom_call.1} parent=5 // pred_check
        _
      $region26: #{tpu_custom_call.1} parent=5 // pred_check_branch
        %193 = sbr.rel (%p190) target = $region28
      $region27: #{tpu_custom_call.1} parent=5 // pred_region
        %s194 = ssub.s32 %s17, 1
        %s195 = sand.u32 %s48, 1
        %s196 = scalar_lea.sflag [#allocation3], %s195
        %s197 = sand.u32 %s48, 1
        %s198 = smul.addr %s197, 16
        %s199 = scalar_lea.vmem [#allocation2], %s198
        // Predicated region
        $region29: #{tpu_custom_call.1} parent=27 // pred_check
          %p200 = pneg %p61
        $region30: #{tpu_custom_call.1} parent=27 // pred_check_branch
          %202 = sbr.rel (%p200) target = $region32
        $region31: #{tpu_custom_call.1} parent=27 // pred_region
          %204 = dma.done %s196, 256
        $region32: #{tpu_custom_call.1} parent=27 // pred_fallthru
          _
        %s205 = sand.u32 %s80, 1
        %s206 = scalar_lea.sflag [#allocation6], %s205
        %s207 = sand.u32 %s80, 1
        %s208 = smul.addr %s207, 8
        %s209 = scalar_lea.vmem [#allocation5], %s208
        // Predicated region
        $region33: #{tpu_custom_call.1} parent=27 // pred_check
          %p210 = pneg %p93
        $region34: #{tpu_custom_call.1} parent=27 // pred_check_branch
          %212 = sbr.rel (%p210) target = $region36
        $region35: #{tpu_custom_call.1} parent=27 // pred_region
          %214 = dma.done %s206, 128
        $region36: #{tpu_custom_call.1} parent=27 // pred_fallthru
          _
        %s215 = sand.u32 %s48, 1
        %s216 = scalar_lea.sflag [#allocation3], %s215
        %s217 = sand.u32 %s48, 1
        %s218 = smul.addr %s217, 16
        %s219 = scalar_lea.vmem [#allocation2], %s218
        %p220 = pneg %p61
        %p221 = pneg %p58
        %s222 = sand.u32 %s80, 1
        %s223 = scalar_lea.sflag [#allocation6], %s222
        %s224 = sand.u32 %s80, 1
        %s225 = smul.addr %s224, 8
        %s226 = scalar_lea.vmem [#allocation5], %s225
        %p227 = pneg %p93
        %p228 = pneg %p90
        %p229 = pneg %p119
        %p230 = pneg %p116
        %s231 = sand.u32 %s106, 1
        %s232 = scalar_lea.sflag [#allocation4], %s231
        %s233 = sand.u32 %s106, 1
        %s234 = smul.addr %s233, 32
        %s235 = scalar_lea.vmem [#allocation7], %s234
        %s236 = sadd.s32 %s26, %s27
        %p237 = scmp.lt.s32.totalorder %s236, 0
        %s238 = scalar_select %p237, %s236, 0
        %s239 = smul.u32 2, %s238
        %s240 = sadd.s32 %s26, %s27
        %p241 = scmp.lt.s32.totalorder %s240, 0
        %s242 = scalar_select %p241, %s240, 0
        %s243 = smul.u32 2, %s242
        %s244 = smul.u32 4, %s26
        %p245 = scmp.eq.s32.totalorder %s27, 0
        // Predicated region
        $region37: #{tpu_custom_call.1} parent=27 // pred_check
          %p246 = pneg %p245
        $region38: #{tpu_custom_call.1} parent=27 // pred_check_branch
          %248 = sbr.rel (%p246) target = $region40
        $region39: #{tpu_custom_call.1} parent=27 // pred_region
          %249 = vst [vmem:[%s235] sm:$0xff] 0.0
          %250 = vst [vmem:[%s235 + $0x8] sm:$0xff] 0.0
          %251 = vst [vmem:[%s235 + $0x10] sm:$0xff] 0.0
          %252 = vst [vmem:[%s235 + $0x18] sm:$0xff] 0.0
        $region40: #{tpu_custom_call.1} parent=27 // pred_fallthru
          _
        %s253 = sadd.s32 %s26, %s27
        %s254 = smul.u32 %s253, 16
        %v255 = vld [vmem:[%s199] sm:$0xff]
        %v256 = vld [vmem:[%s199 + $0x8] sm:$0xff]
        %v257 = vld [vmem:[%s209] sm:$0xf]
        %v258 = vld [vmem:[%s209 + $0x4] sm:$0xf]
        %v259 = vunpack.c.l.bf16 %v257
        %v260 = vunpack.c.l.bf16 %v258
        %v261 = vlaneseq
        %v262 = vshrl.u32 %v261, 7
        %v263 = vadd.s32 %v262, 8
        %s264 = ssub.s32 16, %s254
        %v265 = vstv %s264
        %vm266 = vcmp.lt.s32.totalorder %v262, %v265
        %vm267 = vcmp.lt.s32.totalorder %v263, %v265
        %v268 = vsel %vm266, %v255, -100.0
        %v269 = vsel %vm267, %v256, -100.0
        %v270 = vsel %vm266, %v259, 0.0
        %v271 = vsel %vm267, %v260, 0.0
        %v272 = vand.u32 2147483647, %v268
        %v273 = vand.u32 2147483647, %v269
        %v274 = vsub.f32 0.0, %v272
        %v275 = vsub.f32 0.0, %v273
        %v276 = vmul.f32 %v274, 1.442695
        %v277 = vpow.pop %v276
        %v278 = vmul.f32 %v275, 1.442695
        %v279 = vpow.pop %v278
        %v280 = vadd.f32 %v277, 1.0
        %v281 = vlog2.pop %v280
        %v282 = vmul.f32 %v281, 0.6931472
        %v283 = vmul.f32 -0.5, %v277
        %v284 = vadd.f32 %v283, 1.0
        %v285 = vmul.f32 %v284, %v277
        %v286 = vand.u32 2147483647, %v277
        %vm287 = vcmp.lt.f32.partialorder %v286, 0.0004427343
        %v288 = vsel %vm287, %v285, %v282
        %v289 = vadd.f32 %v279, 1.0
        %v290 = vlog2.pop %v289
        %v291 = vmul.f32 %v290, 0.6931472
        %v292 = vmul.f32 -0.5, %v279
        %v293 = vadd.f32 %v292, 1.0
        %v294 = vmul.f32 %v293, %v279
        %v295 = vand.u32 2147483647, %v279
        %vm296 = vcmp.lt.f32.partialorder %v295, 0.0004427343
        %v297 = vsel %vm296, %v294, %v291
        %v298 = vmax.f32 %v268, 0.0
        %v299 = vmax.f32 %v269, 0.0
        %v300 = vmul.f32 %v268, %v270
        %v301 = vmul.f32 %v269, %v271
        %v302 = vsub.f32 %v298, %v300
        %v303 = vsub.f32 %v299, %v301
        %v304 = vadd.f32 %v302, %v288
        %v305 = vadd.f32 %v303, %v297
        %v306 = vadd.f32 %v277, 1.0
        %v307 = vadd.f32 %v279, 1.0
        %v308 = vrcp.pop %v306
        %v309 = vrcp.pop %v307
        %v310 = vmul.f32 %v306, %v308
        %v311 = vmul.f32 %v307, %v309
        %v312 = vsub.f32 2.0, %v310
        %v313 = vsub.f32 2.0, %v311
        %v314 = vmul.f32 %v308, %v312
        %v315 = vmul.f32 %v309, %v313
        %vm316 = vcmp.ge.f32.partialorder %v268, 0.0
        %vm317 = vcmp.ge.f32.partialorder %v269, 0.0
        %v318 = vmul.f32 %v277, %v314
        %v319 = vmul.f32 %v279, %v315
        %v320 = vsel %vm316, %v314, %v318
        %v321 = vsel %vm317, %v315, %v319
        %v322 = vadd.f32 %v320, %v270
        %v323 = vadd.f32 %v321, %v271
        %v324 = vmul.f32 %v320, %v270
        %v325 = vmul.f32 %v321, %v271
        %v326 = vmul.f32 %v324, 2.0
        %v327 = vmul.f32 %v325, 2.0
        %v328 = vsub.f32 %v322, %v326
        %v329 = vsub.f32 %v323, %v327
        %v330 = vmul.f32 %v328, %v328
        %v331 = vmul.f32 %v329, %v329
        %v332 = vmul.f32 %v330, %v304
        %v333 = vmul.f32 %v331, %v305
        %v334 = vadd.f32 %v332, %v333
        %v335 = vadd.f32 %v334, 0.0
        %v336 = vadd.f32 %v324, %v325
        %v337 = vadd.f32 %v336, 0.0
        %v338 = vadd.f32 %v320, %v321
        %v339 = vadd.f32 %v338, 0.0
        %v340 = vadd.f32 %v270, %v271
        %v341 = vadd.f32 %v340, 0.0
        %v342 = vld [vmem:[%s235] sm:$0xff]
        %v343 = vadd.f32 %v342, %v335
        %344 = vst [vmem:[%s235] sm:$0xff] %v343
        %s345 = scalar_lea.vmem %s235, 8 [#allocation7]
        %v346 = vld [vmem:[%s345] sm:$0xff]
        %v347 = vadd.f32 %v346, %v337
        %348 = vst [vmem:[%s345] sm:$0xff] %v347
        %s349 = scalar_lea.vmem %s235, 16 [#allocation7]
        %v350 = vld [vmem:[%s349] sm:$0xff]
        %v351 = vadd.f32 %v350, %v339
        %352 = vst [vmem:[%s349] sm:$0xff] %v351
        %s353 = scalar_lea.vmem %s235, 24 [#allocation7]
        %v354 = vld [vmem:[%s353] sm:$0xff]
        %v355 = vadd.f32 %v354, %v341
        %356 = vst [vmem:[%s353] sm:$0xff] %v355
        %s357 = sand.u32 %s106, 1
        %s358 = scalar_lea.sflag [#allocation4], %s357
        %s359 = sand.u32 %s106, 1
        %s360 = smul.addr %s359, 32
        %s361 = scalar_lea.vmem [#allocation7], %s360
        // Predicated region
        $region41: #{tpu_custom_call.1} parent=27 // pred_check
          %p362 = pneg %p116
        $region42: #{tpu_custom_call.1} parent=27 // pred_check_branch
          %364 = sbr.rel (%p362) target = $region44
        $region43: #{tpu_custom_call.1} parent=27 // pred_region
          %s365 = smul.u32 4, %s26
          %367 = vsyncadd %s358, 0
          %s368 = smul.addr %s365, 8
          %s369 = scalar_lea.hbm %s2, %s368
          %s370 = sshll.u32 %s361, 4
          %s371 = int_to_ptr.vmem [resolvable:$true] %s370
          %s372 = sshll.u32 %s369, 4
          %s373 = int_to_ptr.hbm [resolvable:$true] %s372
          %378 = dma.vmem_to_hbm [thread:$0]  %s371, 512, %s373, %s358, 128, 128, 8
        $region44: #{tpu_custom_call.1} parent=27 // pred_fallthru
          _
      $region28: #{tpu_custom_call.1} parent=5 // pred_fallthru
        _
      %p379 = scmp.le.s32.totalorder 2, %s17
      // Predicated region
      $region45: #{tpu_custom_call.1} parent=5 // pred_check
        %p380 = pneg %p379
      $region46: #{tpu_custom_call.1} parent=5 // pred_check_branch
        %382 = sbr.rel (%p380) target = $region48
      $region47: #{tpu_custom_call.1} parent=5 // pred_region
        %s383 = ssub.s32 %s17, 2
        // Predicated region
        $region49: #{tpu_custom_call.1} parent=47 // pred_check
          %p384 = pneg %p122
        $region50: #{tpu_custom_call.1} parent=47 // pred_check_branch
          %386 = sbr.rel (%p384) target = $region52
        $region51: #{tpu_custom_call.1} parent=47 // pred_region
          %s387 = sand.u32 %s107, 1
          %s388 = scalar_lea.sflag [#allocation4], %s387
          %s389 = sand.u32 %s107, 1
          %s390 = smul.addr %s389, 32
          %s391 = scalar_lea.vmem [#allocation7], %s390
          %393 = dma.done %s388, 512
        $region52: #{tpu_custom_call.1} parent=47 // pred_fallthru
          _
      $region48: #{tpu_custom_call.1} parent=5 // pred_fallthru
        _
    $region6: #{tpu_custom_call.1} parent=1 // loop_footer
      %s21 = sadd.s32 1, %s17
    $region7: #{tpu_custom_call.1} parent=1 // loop_footer_branch
      %16 = sbr.rel target = $region3
    $region8: #{tpu_custom_call.1} parent=1 // loop_exit
      _
    %394 = vsyncpa [#allocation3], 1
    %s395 = scalar_lea.sflag [#allocation3], 1
    %396 = vsyncpa %s395, 1
    %397 = vsyncpa [#allocation6], 1
    %s398 = scalar_lea.sflag [#allocation6], 1
    %399 = vsyncpa %s398, 1
    %400 = vsyncpa [#allocation4], 1
    %s401 = scalar_lea.sflag [#allocation4], 1
    %402 = vsyncpa %s401, 1

</llo_original>
